<compile_context>
chip_gen: v7x
topology: tpu7x:2x2x1
jax: 0.10.0
libtpu: 0.0.40
codegen_flags: <defaults>
</compile_context>

<pallas_src>
import functools

import jax
import jax.numpy as jnp
from jax.experimental import pallas as pl
from jax.experimental.pallas import tpu as pltpu

_LANE = 128
_TARGET_LANES = 2048                  # spatial tile target (multiple of 128)
_SMALL_PROBLEM_BYTES = 256 * 1024     # below this, plain jnp beats a kernel launch


def _round_up(x, m):
    return ((x + m - 1) // m) * m


def _vmem_budget_bytes():
    """Per-generation budget for double-buffered blocks.

    Stays inside default scoped-VMEM limits (v5e: 16 MiB, v6e/v7x: 32 MiB);
    v7x only has 64 MiB physical VMEM per TensorCore, so leave headroom.
    """
    try:
        kind = jax.devices()[0].device_kind.lower()
    except Exception:  # pragma: no cover - defensive
        kind = ""
    if "v7" in kind:
        return 16 * 1024 * 1024
    if "v6" in kind:
        return 20 * 1024 * 1024
    return 6 * 1024 * 1024            # v5e / unknown: conservative


def _region_prediction_kernel(cp_ref, obj_ref, out_ref, *, thresh, num_classes):
    # cp_ref:  (nb, C,   thw) class probabilities
    # obj_ref: (nb, 1,   thw) objectness
    # out_ref: (nb, C+1, thw) [thresholded conf ; max over classes]
    conf = cp_ref[...] * obj_ref[...]                       # broadcast over classes
    # Match PyTorch `conf[conf <= thresh] = 0` exactly: NaNs pass through
    # because (NaN <= thresh) is False.
    conf = jnp.where(conf <= thresh, jnp.zeros_like(conf), conf)
    max_conf = jnp.max(conf, axis=1, keepdims=True)         # (nb, 1, thw)
    # Two direct stores: lanes stay dense, no concat temp / sublane repack.
    out_ref[:, :num_classes, :] = conf
    out_ref[:, num_classes:num_classes + 1, :] = max_conf


def _reference_impl(class_prob, obj, thresh, class_axis=1):
    """Plain-jnp fallback / fast path (general class_axis)."""
    out_dtype = jnp.result_type(class_prob.dtype, obj.dtype)
    conf = class_prob.astype(out_dtype) * jnp.expand_dims(obj, class_axis).astype(out_dtype)
    conf = jnp.where(conf <= thresh, jnp.zeros_like(conf), conf)
    max_conf = jnp.max(conf, axis=class_axis, keepdims=True)
    return jnp.concatenate([conf, max_conf], axis=class_axis)


def region_prediction(class_prob, obj, *, thresh=0.005, class_axis=1, use_pallas=None):
    """class_prob: (N, C, *spatial), obj: (N, *spatial) -> (N, C+1, *spatial)."""
    if class_axis != 1:
        # TODO(synk): Pallas path assumes class_axis=1 (NCHW); other axes fall
        # back to the fused jnp implementation.
        return _reference_impl(class_prob, obj, thresh, class_axis)

    N, C = class_prob.shape[0], class_prob.shape[1]
    spatial = tuple(class_prob.shape[2:])
    assert obj.shape == (N,) + spatial, "obj must be class_prob with the class axis removed"
    HW = 1
    for d in spatial:
        HW *= d

    out_dtype = jnp.result_type(class_prob.dtype, obj.dtype)
    itemsize = jnp.dtype(out_dtype).itemsize

    if use_pallas is None:
        use_pallas = N * (C + 1) * HW * itemsize >= _SMALL_PROBLEM_BYTES
    if not use_pallas:
        return _reference_impl(class_prob, obj, thresh, class_axis)

    # Free reshapes (contiguous trailing dims), explicit dtype promotion.
    cp = class_prob.astype(out_dtype).reshape(N, C, HW)
    ob = obj.astype(out_dtype).reshape(N, 1, HW)

    # --- spatial tiling: lane-dense (multiple of 128), sized to cover the
    # 128-rounded extent as evenly as possible; NO wrapper pad — the grid is
    # uneven and Mosaic masks the edge block. ------------------------------
    hw_128 = _round_up(HW, _LANE)
    if hw_128 <= _TARGET_LANES:
        thw = hw_128
    else:
        k = -(-hw_128 // _TARGET_LANES)                  # number of tiles (ceil)
        thw = _round_up(-(-hw_128 // k), _LANE)          # per-tile lanes (ceil, 128-aligned)
    n_sp = -(-HW // thw)                                 # spatial grid extent (uneven OK)

    # --- batch blocking: largest nb that fits the VMEM budget while keeping
    # enough grid steps for megacore sharding + pipelining. ----------------
    budget = _vmem_budget_bytes()
    min_steps = min(4, N * n_sp)                         # best achievable at nb=1
    nb = 1
    for cand in (16, 8, 4, 2, 1):
        if N % cand != 0:
            continue
        # cp + obj + out blocks, double-buffered (no extra concat temp now).
        block_bytes = 2 * cand * (2 * C + 2) * thw * itemsize
        if block_bytes > budget:
            continue
        if (N // cand) * n_sp < min_steps:
            continue
        nb = cand
        break

    kernel = functools.partial(_region_prediction_kernel, thresh=thresh, num_classes=C)

    out = pl.pallas_call(
        kernel,
        out_shape=jax.ShapeDtypeStruct((N, C + 1, HW), out_dtype),
        grid_spec=pltpu.PrefetchScalarGridSpec(
            num_scalar_prefetch=0,
            grid=(N // nb, n_sp),
            in_specs=[
                pl.BlockSpec((nb, C, thw), lambda n, s: (n, 0, s)),
                pl.BlockSpec((nb, 1, thw), lambda n, s: (n, 0, s)),
            ],
            out_specs=pl.BlockSpec((nb, C + 1, thw), lambda n, s: (n, 0, s)),
        ),
        compiler_params=pltpu.CompilerParams(
            dimension_semantics=("parallel", "parallel"),
        ),
    )(cp, ob)

    return out.reshape((N, C + 1) + spatial)


if __name__ == "__main__":
    key = jax.random.PRNGKey(0)
    k1, k2, k3, k4 = jax.random.split(key, 4)

    # --- Case 1: small head, HW a multiple of 128 (forced Pallas path) -----
    N, C, H, W = 2, 4, 16, 16
    logits = jax.random.normal(k1, (N, C, H, W), dtype=jnp.float32)
    class_prob = jax.nn.softmax(logits, axis=1)
    obj = jax.nn.sigmoid(jax.random.normal(k2, (N, H, W), dtype=jnp.float32))

    out = jax.block_until_ready(
        region_prediction(class_prob, obj, thresh=0.005, use_pallas=True))
    ref = _reference_impl(class_prob, obj, 0.005)
    assert out.shape == (N, C + 1, H, W)
    assert jnp.allclose(out, ref, atol=1e-6), "pallas path mismatch (HW % 128 == 0)"

    # Auto path: tiny problem -> fused jnp fast path, must agree too.
    out_auto = jax.block_until_ready(region_prediction(class_prob, obj, thresh=0.005))
    assert jnp.allclose(out_auto, ref, atol=1e-6), "fast path mismatch"

    # --- Case 2: HW NOT a multiple of 128 -> exercises the masked edge block
    N2, C2, H2, W2 = 2, 4, 13, 13
    logits2 = jax.random.normal(k3, (N2, C2, H2, W2), dtype=jnp.float32)
    class_prob2 = jax.nn.softmax(logits2, axis=1)
    obj2 = jax.nn.sigmoid(jax.random.normal(k4, (N2, H2, W2), dtype=jnp.float32))

    out2 = jax.block_until_ready(
        region_prediction(class_prob2, obj2, thresh=0.005, use_pallas=True))
    ref2 = _reference_impl(class_prob2, obj2, 0.005)
    assert out2.shape == (N2, C2 + 1, H2, W2)
    assert jnp.allclose(out2, ref2, atol=1e-6), "pallas path mismatch (uneven edge block)"

    print("KERNEL_OK")
</pallas_src>

<mosaic_0001>
module attributes {stable_mosaic.version = 11 : i64} {
  func.func @_region_prediction_kernel(%arg0: i32, %arg1: i32, %arg2: memref<1x4x256xf32, #tpu.memory_space<vmem>>, %arg3: memref<1x1x256xf32, #tpu.memory_space<vmem>>, %arg4: memref<1x5x256xf32, #tpu.memory_space<vmem>>) attributes {dimension_semantics = [#tpu.dimension_semantics<parallel>, #tpu.dimension_semantics<parallel>], iteration_bounds = array<i64: 2, 1>, scalar_prefetch = 0 : i64, scratch_operands = 0 : i64, tpu.core_type = #tpu.core_type<tc>, window_params = [{transform_indices = @transform_0, window_bounds = array<i64: 1, 4, 256>}, {transform_indices = @transform_1, window_bounds = array<i64: 1, 1, 256>}, {transform_indices = @transform_2, window_bounds = array<i64: 1, 5, 256>}]} {
    %c0 = arith.constant 0 : index
    %c0_0 = arith.constant 0 : index
    %c0_1 = arith.constant 0 : index
    %0 = vector.load %arg2[%c0, %c0_0, %c0_1] : memref<1x4x256xf32, #tpu.memory_space<vmem>>, vector<1x4x256xf32>
    %c0_2 = arith.constant 0 : index
    %c0_3 = arith.constant 0 : index
    %c0_4 = arith.constant 0 : index
    %1 = vector.load %arg3[%c0_2, %c0_3, %c0_4] : memref<1x1x256xf32, #tpu.memory_space<vmem>>, vector<1x1x256xf32>
    %2 = vector.broadcast %1 : vector<1x1x256xf32> to vector<1x4x256xf32>
    %3 = arith.mulf %0, %2 : vector<1x4x256xf32>
    %cst = arith.constant 5.000000e-03 : f32
    %4 = vector.broadcast %cst : f32 to vector<1x4x256xf32>
    %5 = arith.cmpf ole, %3, %4 : vector<1x4x256xf32>
    %cst_5 = arith.constant 0.000000e+00 : f32
    %6 = vector.broadcast %cst_5 : f32 to vector<1x4x256xf32>
    %7 = arith.select %5, %6, %3 : vector<1x4x256xi1>, vector<1x4x256xf32>
    %cst_6 = arith.constant dense<0xFF800000> : vector<1x256xf32>
    %8 = vector.multi_reduction <maximumf>, %7, %cst_6 [1] : vector<1x4x256xf32> to vector<1x256xf32>
    %9 = vector.shape_cast %8 : vector<1x256xf32> to vector<1x1x256xf32>
    %c0_7 = arith.constant 0 : index
    %c0_8 = arith.constant 0 : index
    %c0_9 = arith.constant 0 : index
    %10 = vector.load %arg4[%c0_7, %c0_8, %c0_9] : memref<1x5x256xf32, #tpu.memory_space<vmem>>, vector<1x4x256xf32>
    tpu.vector_store %arg4[%c0_7, %c0_8, %c0_9], %7 {strides = array<i32>} : memref<1x5x256xf32, #tpu.memory_space<vmem>>, vector<1x4x256xf32>,
    %c0_10 = arith.constant 0 : index
    %c4 = arith.constant 4 : index
    %c0_11 = arith.constant 0 : index
    %11 = vector.load %arg4[%c0_10, %c4, %c0_11] : memref<1x5x256xf32, #tpu.memory_space<vmem>>, vector<1x1x256xf32>
    tpu.vector_store %arg4[%c0_10, %c4, %c0_11], %9 {strides = array<i32>} : memref<1x5x256xf32, #tpu.memory_space<vmem>>, vector<1x1x256xf32>,
    return
  }
  func.func @transform_0(%arg0: i32, %arg1: i32) -> (i32, i32, i32) {
    %c0_i32 = arith.constant 0 : i32
    %c0_i32_0 = arith.constant 0 : i32
    return %arg0, %c0_i32, %arg1 : i32, i32, i32
  }
  func.func @transform_1(%arg0: i32, %arg1: i32) -> (i32, i32, i32) {
    %c0_i32 = arith.constant 0 : i32
    %c0_i32_0 = arith.constant 0 : i32
    return %arg0, %c0_i32, %arg1 : i32, i32, i32
  }
  func.func @transform_2(%arg0: i32, %arg1: i32) -> (i32, i32, i32) {
    %c0_i32 = arith.constant 0 : i32
    %c0_i32_0 = arith.constant 0 : i32
    return %arg0, %c0_i32, %arg1 : i32, i32, i32
  }
}

</mosaic_0001>

<llo_original>
// kernel: tpu_custom_call.1
$region0: #{tpu_custom_call.1}
  #allocation0 [shape = 'u32[]', space=smem, size = 0x4, offset = 0x4, fixed_abs, tag = 'smem constant byte address 0x4 - core index']
  #allocation1 [shape = 'u32[144,128]{1,0:T(1,128)}', space=vmem, size = 0x12000, scoped, tag = 'internal scratch']
  %s0 = inlined_call_operand.hbm [shape: f32[2,4,256], index: 0, kind: input, shape index: {}]
  %s1 = inlined_call_operand.hbm [shape: f32[2,1,256], index: 1, kind: input, shape index: {}]
  %s2 = inlined_call_operand.vmem [shape: f32[2,5,256], index: 2, kind: output, shape index: {}]
  %s3 = sld [smem:[#allocation0]]
  $region49: #{tpu_custom_call.1} parent=0
    _
  %s5 = ssub.s32 1, %s3
  %s6 = scalar_select 0, %s5, %s3
  $region1: #{tpu_custom_call.1} parent=0
    #allocation2 [shape = 'u8[8192]{0}', space=vmem, size = 0x2000, scoped, tag = 'input window, operand 0']
    #allocation3 [shape = 's32[2]{0}', space=sflag, size = 0x8, scoped, tag = 'scoped memory for tpu_custom_call.1']
    #allocation4 [shape = 'u8[2048]{0}', space=vmem, size = 0x800, scoped, tag = 'input window, operand 1']
    #allocation5 [shape = 's32[2]{0}', space=sflag, size = 0x8, scoped, tag = 'scoped memory for tpu_custom_call.1']
    %7 = vsyncpa [#allocation3], 0
    %s8 = scalar_lea.sflag [#allocation3], 1
    %9 = vsyncpa %s8, 0
    %10 = vsyncpa [#allocation5], 0
    %s11 = scalar_lea.sflag [#allocation5], 1
    %12 = vsyncpa %s11, 0
    loop: start=0, step=1, limit=4
    $region2: #{tpu_custom_call.1} parent=1 // loop_pre_header
      _
    $region3: #{tpu_custom_call.1} parent=1 // loop_header
      %s14 = sphi 0, %s18
      %p15 = scmp.ge.s32.totalorder %s14, 4
      %s21 = sphi 0, %s33
      %s22 = sphi 0, %s29
      %s23 = sphi 0, %s21
      %s24 = sphi 0, %s22
      %s25 = sphi 0, %s23
      %s26 = sphi 0, %s24
      %s38 = sphi 0, %s40
      %s41 = sphi 0, %s38
      %s42 = sphi 0, %s41
      %s58 = sphi 0, %s42
      %s66 = sphi 0, %s68
      %s69 = sphi 0, %s66
      %s70 = sphi 0, %s69
      %s86 = sphi 0, %s70
      %s94 = sphi 0, %s96
      %s97 = sphi 0, %s94
      %s98 = sphi 0, %s97
      %s114 = sphi 0, %s98
    $region4: #{tpu_custom_call.1} parent=1 // loop_header_branch
      %17 = sbr.rel (%p15) target = $region8
    $region5: #{tpu_custom_call.1} parent=1 // loop_body
      %s19 = ssub.s32 %s14, 1
      %s20 = ssub.s32 %s14, 2
      %s27 = sadd.s32 1, %s22
      %p28 = scmp.ge.s32.totalorder %s27, 1
      %s29 = scalar_select %p28, 0, %s27
      %s30 = sadd.s32 1, %s21
      %s31 = scalar_select %p28, %s30, %s21
      %p32 = scmp.ge.s32.totalorder %s31, 2
      %s33 = scalar_select %p32, 0, %s31
      %s34 = ssub.s32 %s21, %s33
      %s35 = ssub.s32 %s22, %s29
      %s36 = sor.u32 %s34, %s35
      %p37 = scmp.eq.s32.totalorder %s36, 0
      %s39 = sadd.s32 %s38, 1
      %s40 = scalar_select %p37, %s38, %s39
      %p43 = pneg %p37
      %p44 = scmp.eq.s32.totalorder %s14, 1
      %p45 = por %p43, %p44
      %p46 = scmp.ne.s32.totalorder %s38, %s41
      %p47 = scmp.eq.s32.totalorder %s14, 0
      %p48 = por %p46, %p47
      %p49 = scmp.ne.s32.totalorder %s38, %s41
      %p50 = scmp.eq.s32.totalorder %s19, 1
      %p51 = por %p49, %p50
      %p52 = scmp.ne.s32.totalorder %s41, %s42
      %p53 = scmp.eq.s32.totalorder %s19, 0
      %p54 = por %p52, %p53
      %p55 = scmp.ne.s32.totalorder %s41, %s42
      %p56 = scmp.eq.s32.totalorder %s20, 1
      %p57 = por %p55, %p56
      %p59 = scmp.ne.s32.totalorder %s42, %s58
      %p60 = scmp.eq.s32.totalorder %s20, 0
      %p61 = por %p59, %p60
      %s62 = ssub.s32 %s21, %s33
      %s63 = ssub.s32 %s22, %s29
      %s64 = sor.u32 %s62, %s63
      %p65 = scmp.eq.s32.totalorder %s64, 0
      %s67 = sadd.s32 %s66, 1
      %s68 = scalar_select %p65, %s66, %s67
      %p71 = pneg %p65
      %p72 = scmp.eq.s32.totalorder %s14, 1
      %p73 = por %p71, %p72
      %p74 = scmp.ne.s32.totalorder %s66, %s69
      %p75 = scmp.eq.s32.totalorder %s14, 0
      %p76 = por %p74, %p75
      %p77 = scmp.ne.s32.totalorder %s66, %s69
      %p78 = scmp.eq.s32.totalorder %s19, 1
      %p79 = por %p77, %p78
      %p80 = scmp.ne.s32.totalorder %s69, %s70
      %p81 = scmp.eq.s32.totalorder %s19, 0
      %p82 = por %p80, %p81
      %p83 = scmp.ne.s32.totalorder %s69, %s70
      %p84 = scmp.eq.s32.totalorder %s20, 1
      %p85 = por %p83, %p84
      %p87 = scmp.ne.s32.totalorder %s70, %s86
      %p88 = scmp.eq.s32.totalorder %s20, 0
      %p89 = por %p87, %p88
      %s90 = ssub.s32 %s21, %s33
      %s91 = ssub.s32 %s22, %s29
      %s92 = sor.u32 %s90, %s91
      %p93 = scmp.eq.s32.totalorder %s92, 0
      %s95 = sadd.s32 %s94, 1
      %s96 = scalar_select %p93, %s94, %s95
      %p99 = pneg %p93
      %p100 = scmp.eq.s32.totalorder %s14, 1
      %p101 = por %p99, %p100
      %p102 = scmp.ne.s32.totalorder %s94, %s97
      %p103 = scmp.eq.s32.totalorder %s14, 0
      %p104 = por %p102, %p103
      %p105 = scmp.ne.s32.totalorder %s94, %s97
      %p106 = scmp.eq.s32.totalorder %s19, 1
      %p107 = por %p105, %p106
      %p108 = scmp.ne.s32.totalorder %s97, %s98
      %p109 = scmp.eq.s32.totalorder %s19, 0
      %p110 = por %p108, %p109
      %p111 = scmp.ne.s32.totalorder %s97, %s98
      %p112 = scmp.eq.s32.totalorder %s20, 1
      %p113 = por %p111, %p112
      %p115 = scmp.ne.s32.totalorder %s98, %s114
      %p116 = scmp.eq.s32.totalorder %s20, 0
      %p117 = por %p115, %p116
      %p118 = scmp.le.s32.totalorder 1, %s14
      %p119 = scmp.lt.s32.totalorder %s14, 3
      %p120 = pnand %p118, %p119
      %p121 = pneg %p120
      // Predicated region
      $region9: #{tpu_custom_call.1} parent=5 // pred_check
        _
      $region10: #{tpu_custom_call.1} parent=5 // pred_check_branch
        %123 = sbr.rel (%p120) target = $region12
      $region11: #{tpu_custom_call.1} parent=5 // pred_region
        %s124 = ssub.s32 %s14, 1
      $region12: #{tpu_custom_call.1} parent=5 // pred_fallthru
        _
      %p125 = scmp.lt.s32.totalorder %s14, 2
      // Predicated region
      $region13: #{tpu_custom_call.1} parent=5 // pred_check
        %p126 = pneg %p125
      $region14: #{tpu_custom_call.1} parent=5 // pred_check_branch
        %128 = sbr.rel (%p126) target = $region16
      $region15: #{tpu_custom_call.1} parent=5 // pred_region
        // Predicated region
        $region17: #{tpu_custom_call.1} parent=15 // pred_check
          %p129 = pneg %p48
        $region18: #{tpu_custom_call.1} parent=15 // pred_check_branch
          %131 = sbr.rel (%p129) target = $region20
        $region19: #{tpu_custom_call.1} parent=15 // pred_region
          %s132 = sand.u32 %s38, 1
          %s133 = scalar_lea.sflag [#allocation3], %s132
          %s134 = sand.u32 %s38, 1
          %s135 = smul.addr %s134, 8
          %s136 = scalar_lea.vmem [#allocation2], %s135
          %s137 = smul.u32 2, %s22
          %s139 = ssub.s32 128, 128
          %140 = vsyncadd %s133, %s139
          %s141 = smul.addr %s21, 2
          %s142 = sadd.s32 %s137, %s141
          %s143 = smul.addr %s142, 64
          %s144 = scalar_lea.hbm %s0, %s143
          %s146 = sshll.u32 %s136, 4
          %s147 = int_to_ptr.vmem [resolvable:$true] %s146
          %149 = dma.hbm_to_vmem [thread:$0]  %s144, 128, %s147, %s133
        $region20: #{tpu_custom_call.1} parent=15 // pred_fallthru
          _
        // Predicated region
        $region21: #{tpu_custom_call.1} parent=15 // pred_check
          %p150 = pneg %p76
        $region22: #{tpu_custom_call.1} parent=15 // pred_check_branch
          %152 = sbr.rel (%p150) target = $region24
        $region23: #{tpu_custom_call.1} parent=15 // pred_region
          %s153 = sand.u32 %s66, 1
          %s154 = scalar_lea.sflag [#allocation5], %s153
          %s155 = sand.u32 %s66, 1
          %s156 = smul.addr %s155, 2
          %s157 = scalar_lea.vmem [#allocation4], %s156
          %s158 = smul.u32 2, %s22
          %s160 = ssub.s32 32, 32
          %161 = vsyncadd %s154, %s160
          %s162 = smul.addr %s21, 2
          %s163 = sadd.s32 %s158, %s162
          %s164 = smul.addr %s163, 16
          %s165 = scalar_lea.hbm %s1, %s164
          %s167 = sshll.u32 %s157, 4
          %s168 = int_to_ptr.vmem [resolvable:$true] %s167
          %170 = dma.hbm_to_vmem [thread:$0]  %s165, 32, %s168, %s154
        $region24: #{tpu_custom_call.1} parent=15 // pred_fallthru
          _
      $region16: #{tpu_custom_call.1} parent=5 // pred_fallthru
        _
      %p171 = scmp.le.s32.totalorder 1, %s14
      %p172 = scmp.lt.s32.totalorder %s14, 3
      %p173 = pnand %p171, %p172
      %p174 = pneg %p173
      // Predicated region
      $region25: #{tpu_custom_call.1} parent=5 // pred_check
        _
      $region26: #{tpu_custom_call.1} parent=5 // pred_check_branch
        %176 = sbr.rel (%p173) target = $region28
      $region27: #{tpu_custom_call.1} parent=5 // pred_region
        %s177 = ssub.s32 %s14, 1
        %s178 = sand.u32 %s41, 1
        %s179 = scalar_lea.sflag [#allocation3], %s178
        %s180 = sand.u32 %s41, 1
        %s181 = smul.addr %s180, 8
        %s182 = scalar_lea.vmem [#allocation2], %s181
        // Predicated region
        $region29: #{tpu_custom_call.1} parent=27 // pred_check
          %p183 = pneg %p54
        $region30: #{tpu_custom_call.1} parent=27 // pred_check_branch
          %185 = sbr.rel (%p183) target = $region32
        $region31: #{tpu_custom_call.1} parent=27 // pred_region
          %186 = dma.done %s179, 128
        $region32: #{tpu_custom_call.1} parent=27 // pred_fallthru
          _
        %s187 = sand.u32 %s69, 1
        %s188 = scalar_lea.sflag [#allocation5], %s187
        %s189 = sand.u32 %s69, 1
        %s190 = smul.addr %s189, 2
        %s191 = scalar_lea.vmem [#allocation4], %s190
        // Predicated region
        $region33: #{tpu_custom_call.1} parent=27 // pred_check
          %p192 = pneg %p82
        $region34: #{tpu_custom_call.1} parent=27 // pred_check_branch
          %194 = sbr.rel (%p192) target = $region36
        $region35: #{tpu_custom_call.1} parent=27 // pred_region
          %195 = dma.done %s188, 32
        $region36: #{tpu_custom_call.1} parent=27 // pred_fallthru
          _
        %s196 = sand.u32 %s41, 1
        %s197 = scalar_lea.sflag [#allocation3], %s196
        %s198 = sand.u32 %s41, 1
        %s199 = smul.addr %s198, 8
        %s200 = scalar_lea.vmem [#allocation2], %s199
        %p201 = pneg %p54
        %p202 = pneg %p51
        %s203 = sand.u32 %s69, 1
        %s204 = scalar_lea.sflag [#allocation5], %s203
        %s205 = sand.u32 %s69, 1
        %s206 = smul.addr %s205, 2
        %s207 = scalar_lea.vmem [#allocation4], %s206
        %p208 = pneg %p82
        %p209 = pneg %p79
        %p210 = pneg %p110
        %p211 = pneg %p107
        %s212 = smul.u32 2, %s24
        %p213 = scmp.lt.s32.totalorder %s23, 1
        %s214 = scalar_select %p213, %s23, 1
        %p215 = scmp.lt.s32.totalorder %s212, 1
        %s216 = scalar_select %p215, %s212, 1
        %s217 = smul.addr %s214, 2
        %s218 = sadd.s32 %s216, %s217
        %s219 = smul.addr %s218, 8
        %s220 = scalar_lea.vmem %s2, %s219
        %s221 = smul.u32 2, %s24
        %s222 = smul.u32 2, %s24
        %s223 = smul.u32 2, %s24
        %p224 = scmp.lt.s32.totalorder %s23, 1
        %s225 = scalar_select %p224, %s23, 1
        %p226 = scmp.lt.s32.totalorder %s223, 1
        %s227 = scalar_select %p226, %s223, 1
        %s228 = smul.addr %s225, 2
        %s229 = sadd.s32 %s227, %s228
        %s230 = smul.addr %s229, 8
        %s231 = scalar_lea.vmem %s2, %s230
        %s232 = smul.u32 2, %s24
        %v233 = vld [vmem:[%s182] sm:$0xff]
        %v234 = vld [vmem:[%s191] sm:$0x3]
        %v236 = vlaneseq
        %v237 = vshrl.u32 %v236, 7
        %v238 = vsub.s32 0, %v237
        %v239 = vrot.slane %v234, %v238
        %v240 = vlaneseq
        %v241 = vshrl.u32 %v240, 7
        %v242 = vsub.s32 1, %v241
        %v243 = vrot.slane %v234, %v242
        %v244 = vcombine.low %v239, %v243
        %v246 = vmul.f32 %v233, %v244
        %vm247 = vcmp.le.f32.partialorder %v246, 0.005
        %v248 = vsel %vm247, 0.0, %v246
        %v250 = vcombine.high %v248, %v248
        %vm252 = vcmask 1043456
        %v253 = vsel %vm252, %v248, -inf
        %v254 = vrot.slane %v253, 4
        %v255 = vmax.f32 %v253, %v254
        %v256 = vrot.slane %v255, 2
        %v257 = vmax.f32 %v255, %v256
        %v258 = vrot.slane %v257, 1
        %v259 = vmax.f32 %v257, %v258
        %v260 = vsel %vm252, %v250, -inf
        %v261 = vrot.slane %v260, 4
        %v262 = vmax.f32 %v260, %v261
        %v263 = vrot.slane %v262, 2
        %v264 = vmax.f32 %v262, %v263
        %v265 = vrot.slane %v264, 1
        %v266 = vmax.f32 %v264, %v265
        %267 = vst [vmem:[%s231] sm:$0xf] %v248
        %268 = vst [vmem:[%s231 + $0x8] sm:$0xf] %v250
        %v271 = vcombine.low %v259, %v266
        %v273 = vunpack.c.l.s4 1966171168
        %v274 = vunpack.c.0.s8 %v273
        %v275 = vlaneseq
        %v276 = vshrl.u32 %v275, 7
        %v277 = vsub.s32 %v274, %v276
        %v278 = vrot.slane %v271, %v277
        %v280 = vunpack.c.l.s4 1966171168
        %v281 = vunpack.c.0.s8 %v280
        %v282 = vlaneseq
        %v283 = vshrl.u32 %v282, 7
        %v284 = vsub.s32 %v281, %v283
        %v285 = vrot.slane %v278, %v284
        %v287 = vlaneseq
        %vm288 = vcmp.ge.s32.totalorder %v287, 0
        %vm289 = vcmp.lt.s32.totalorder %v287, 256
        %vm290 = vmand %vm288, %vm289
        %s291 = scalar_lea.vmem %s231, 4
        %292 = vst.msk [vmem:[%s291] ss:$8 sm:$0x3] %vm290, %v285
        %293 = vst.msk [vmem:[%s291] ss:$8 sm:$0x0] %vm290, %v285
        %s294 = smul.u32 2, %s24
        %p295 = scmp.lt.s32.totalorder %s23, 1
        %s296 = scalar_select %p295, %s23, 1
        %p297 = scmp.lt.s32.totalorder %s294, 1
        %s298 = scalar_select %p297, %s294, 1
        %s299 = smul.addr %s296, 2
        %s300 = sadd.s32 %s298, %s299
        %s301 = smul.addr %s300, 8
        %s302 = scalar_lea.vmem %s2, %s301
        // Predicated region
        $region37: #{tpu_custom_call.1} parent=27 // pred_check
          %p303 = pneg %p107
        $region38: #{tpu_custom_call.1} parent=27 // pred_check_branch
          %305 = sbr.rel (%p303) target = $region40
        $region39: #{tpu_custom_call.1} parent=27 // pred_region
          %s306 = smul.u32 2, %s24
        $region40: #{tpu_custom_call.1} parent=27 // pred_fallthru
          _
      $region28: #{tpu_custom_call.1} parent=5 // pred_fallthru
        _
      %p307 = scmp.le.s32.totalorder 2, %s14
      // Predicated region
      $region41: #{tpu_custom_call.1} parent=5 // pred_check
        %p308 = pneg %p307
      $region42: #{tpu_custom_call.1} parent=5 // pred_check_branch
        %310 = sbr.rel (%p308) target = $region44
      $region43: #{tpu_custom_call.1} parent=5 // pred_region
        %s311 = ssub.s32 %s14, 2
        // Predicated region
        $region45: #{tpu_custom_call.1} parent=43 // pred_check
          %p312 = pneg %p113
        $region46: #{tpu_custom_call.1} parent=43 // pred_check_branch
          %314 = sbr.rel (%p312) target = $region48
        $region47: #{tpu_custom_call.1} parent=43 // pred_region
          %s315 = smul.u32 2, %s26
          %p316 = scmp.lt.s32.totalorder %s25, 1
          %s317 = scalar_select %p316, %s25, 1
          %p318 = scmp.lt.s32.totalorder %s315, 1
          %s319 = scalar_select %p318, %s315, 1
          %s320 = smul.addr %s317, 2
          %s321 = sadd.s32 %s319, %s320
          %s322 = smul.addr %s321, 8
          %s323 = scalar_lea.vmem %s2, %s322
        $region48: #{tpu_custom_call.1} parent=43 // pred_fallthru
          _
      $region44: #{tpu_custom_call.1} parent=5 // pred_fallthru
        _
    $region6: #{tpu_custom_call.1} parent=1 // loop_footer
      %s18 = sadd.s32 1, %s14
    $region7: #{tpu_custom_call.1} parent=1 // loop_footer_branch
      %13 = sbr.rel target = $region3
    $region8: #{tpu_custom_call.1} parent=1 // loop_exit
      _
    %324 = vsyncpa [#allocation3], 1
    %s325 = scalar_lea.sflag [#allocation3], 1
    %326 = vsyncpa %s325, 1
    %327 = vsyncpa [#allocation5], 1
    %s328 = scalar_lea.sflag [#allocation5], 1
    %329 = vsyncpa %s328, 1

</llo_original>
